<compile_context>
chip_gen: v7x
topology: tpu7x:2x2x1
jax: 0.10.0
libtpu: 0.0.40
codegen_flags: <defaults>
</compile_context>

<pallas_src>
import jax
import jax.numpy as jnp
from jax.experimental import pallas as pl
from jax.experimental.pallas import tpu as pltpu

# ---- model dims (small, consistent with the module's forward) ----
B = 2        # batch
S = 8        # seq length (max_seq_length analogue)
H = 32       # transformer hidden size (auto_model.config.hidden_size)
T = 16       # topic embedding dimension (W.shape[1])
F = 64       # FFN intermediate size
VOCAB = 64   # vocab size (topic_embedding has VOCAB rows, indexed by input_ids)
BS = B * S   # all rows processed in one kernel invocation


def _layer_norm(x, gamma, beta, eps=1e-12):
    mu = jnp.mean(x, axis=-1, keepdims=True)
    var = jnp.mean((x - mu) ** 2, axis=-1, keepdims=True)
    return (x - mu) * jax.lax.rsqrt(var + eps) * gamma + beta


def encoder_kernel(x_ref, bias_ref, wslab_ref, w2_ref, p_ref, out_ref):
    """One BERT-style encoder layer over all B*S rows in a single step.

    x_ref     : [BS, H]            word + position embeddings
    bias_ref  : [BS, BS]           additive attention bias (batch block-diag + key pad)
    wslab_ref : [H, 3H + H + F]    columns = [Wq | Wk | Wv | Wo | W1]
    w2_ref    : [F, H]
    p_ref     : [10, 128]          rows = [bqkv, bo, b1, b2, ln0_g, ln0_b,
                                           ln1_g, ln1_b, ln2_g, ln2_b] (zero-padded)
    out_ref   : [BS, H]            encoder output (topic concat / CLS done in wrapper)
    """
    x = x_ref[...]
    bias = bias_ref[...]
    w = wslab_ref[...]
    w2 = w2_ref[...]
    p = p_ref[...]

    b_qkv = p[0:1, : 3 * H]
    b_o = p[1:2, :H]
    b_1 = p[2:3, :F]
    b_2 = p[3:4, :H]
    ln0_g, ln0_b = p[4:5, :H], p[5:6, :H]
    ln1_g, ln1_b = p[6:7, :H], p[7:8, :H]
    ln2_g, ln2_b = p[8:9, :H], p[9:10, :H]

    # embedding layernorm
    h = _layer_norm(x, ln0_g, ln0_b)

    # fused QKV projection: one weight slab / one MXU push serves q, k, v
    # TODO(synk): single attention head of width H (multi-head split of the
    # synthetic encoder is an architecture detail, not part of this module's forward).
    qkv = jnp.dot(h, w[:, : 3 * H], preferred_element_type=jnp.float32) + b_qkv
    q = qkv[:, :H]
    k = qkv[:, H:2 * H]
    v = qkv[:, 2 * H:3 * H]

    # q @ k^T without explicit transpose (dot_general with rhs-contraction on dim 1)
    scores = jax.lax.dot_general(
        q, k, (((1,), (1,)), ((), ())),
        preferred_element_type=jnp.float32) * (1.0 / (H ** 0.5))
    scores = scores + bias  # masks cross-batch attention and padded keys

    # softmax with EUP reciprocal (no divide on the VALU)
    m = jnp.max(scores, axis=-1, keepdims=True)
    e = jnp.exp(scores - m)
    probs = e * pl.reciprocal(jnp.sum(e, axis=-1, keepdims=True), approx=True)

    ctx = jnp.dot(probs, v, preferred_element_type=jnp.float32)
    attn = jnp.dot(ctx, w[:, 3 * H:4 * H],
                   preferred_element_type=jnp.float32) + b_o
    h = _layer_norm(h + attn, ln1_g, ln1_b)

    # feed-forward
    ff = jnp.dot(h, w[:, 4 * H:4 * H + F],
                 preferred_element_type=jnp.float32) + b_1
    # TODO(synk): HF BERT uses exact erf GELU; tanh approximation used here.
    ff = jax.nn.gelu(ff, approximate=True)
    ff = jnp.dot(ff, w2, preferred_element_type=jnp.float32) + b_2
    h = _layer_norm(h + ff, ln2_g, ln2_b)

    out_ref[...] = h


def init_params(key):
    ks = jax.random.split(key, 16)
    n = lambda k, shp, s=0.02: (s * jax.random.normal(k, shp)).astype(jnp.float32)
    p = {
        # embedding tables (glue, looked up in plain JAX)
        "word_emb": n(ks[0], (VOCAB, H)),
        "pos_emb": n(ks[1], (S, H)),
        # topic_weight W  (nn.Embedding(VOCAB, T))
        "topic_emb": n(ks[2], (VOCAB, T)),
        # encoder weights (packed and consumed inside the Pallas kernel)
        "ln0_g": jnp.ones((1, H), jnp.float32), "ln0_b": jnp.zeros((1, H), jnp.float32),
        "wq": n(ks[3], (H, H)), "bq": jnp.zeros((1, H), jnp.float32),
        "wk": n(ks[4], (H, H)), "bk": jnp.zeros((1, H), jnp.float32),
        "wv": n(ks[5], (H, H)), "bv": jnp.zeros((1, H), jnp.float32),
        "wo": n(ks[6], (H, H)), "bo": jnp.zeros((1, H), jnp.float32),
        "ln1_g": jnp.ones((1, H), jnp.float32), "ln1_b": jnp.zeros((1, H), jnp.float32),
        "w1": n(ks[7], (H, F)), "b1": jnp.zeros((1, F), jnp.float32),
        "w2": n(ks[8], (F, H)), "b2": jnp.zeros((1, H), jnp.float32),
        "ln2_g": jnp.ones((1, H), jnp.float32), "ln2_b": jnp.zeros((1, H), jnp.float32),
    }
    return p


def _pack_encoder_params(params):
    """Fuse 18 small weight/bias/LN tensors into 3 kernel inputs."""
    wslab = jnp.concatenate(
        [params["wq"], params["wk"], params["wv"], params["wo"], params["w1"]],
        axis=1)                                            # [H, 3H + H + F]
    w2 = params["w2"]                                      # [F, H]

    def row(vec):
        vec = jnp.ravel(vec).astype(jnp.float32)
        return jnp.pad(vec, (0, 128 - vec.shape[0]))[None, :]

    pslab = jnp.concatenate([
        row(jnp.concatenate([jnp.ravel(params["bq"]),
                             jnp.ravel(params["bk"]),
                             jnp.ravel(params["bv"])])),   # row 0: bqkv (3H)
        row(params["bo"]), row(params["b1"]), row(params["b2"]),
        row(params["ln0_g"]), row(params["ln0_b"]),
        row(params["ln1_g"]), row(params["ln1_b"]),
        row(params["ln2_g"]), row(params["ln2_b"]),
    ], axis=0)                                             # [10, 128]
    return wslab, w2, pslab


def transformer_topic_forward(params, features):
    """Mirrors Transformer_Topic.forward: returns updated features dict."""
    input_ids = features["input_ids"]            # [B, S] int32
    attention_mask = features["attention_mask"]  # [B, S] int32/float
    bsz, seq = input_ids.shape
    bs = bsz * seq

    # Glue: embedding lookups (word+pos for the synthetic encoder, topic table).
    x = params["word_emb"][input_ids] + params["pos_emb"][None, :, :]   # [B,S,H]
    x = x.reshape(bs, H).astype(jnp.float32)
    topic = params["topic_emb"][input_ids]                              # [B,S,T]

    # Additive attention bias over the flat [BS, BS] score matrix:
    # block-diagonal per batch + key padding mask (same semantics as per-batch attn).
    batch_ids = jnp.repeat(jnp.arange(bsz, dtype=jnp.int32), seq)
    same_batch = batch_ids[:, None] == batch_ids[None, :]
    key_valid = attention_mask.reshape(bs).astype(bool)
    attn_bias = jnp.where(same_batch & key_valid[None, :],
                          0.0, -1e9).astype(jnp.float32)                # [BS, BS]

    wslab, w2, pslab = _pack_encoder_params(params)

    full2d = lambda a: pl.BlockSpec(a.shape, lambda i: (0, 0))

    h = pl.pallas_call(
        encoder_kernel,
        grid=(1,),  # single invocation: all B*S rows at once (no per-batch grid overhead)
        in_specs=[full2d(x), full2d(attn_bias), full2d(wslab),
                  full2d(w2), full2d(pslab)],
        out_specs=pl.BlockSpec((bs, H), lambda i: (0, 0)),
        out_shape=jax.ShapeDtypeStruct((bs, H), jnp.float32),
        compiler_params=pltpu.CompilerParams(dimension_semantics=("arbitrary",)),
    )(x, attn_bias, wslab, w2, pslab)

    # torch.cat((output_tokens, token_topic_embeds), 2) and CLS slice are pure
    # passthrough -> done here as free XLA ops (keeps kernel outputs minimal).
    token_embeddings = jnp.concatenate([h.reshape(bsz, seq, H), topic], axis=-1)
    cls_token_embeddings = token_embeddings[:, 0, :]

    new_features = dict(features)
    new_features.update({
        "token_embeddings": token_embeddings,             # [B, S, H+T]
        "cls_token_embeddings": cls_token_embeddings,     # [B, H+T]
        "attention_mask": attention_mask,
    })
    # output_hidden_states is False for the synthetic encoder -> no all_layer_embeddings
    return new_features


if __name__ == "__main__":
    key = jax.random.PRNGKey(0)
    pkey, ikey = jax.random.split(key)
    params = init_params(pkey)

    input_ids = jax.random.randint(ikey, (B, S), 0, VOCAB, dtype=jnp.int32)
    attention_mask = jnp.ones((B, S), dtype=jnp.int32)
    attention_mask = attention_mask.at[1, 6:].set(0)   # pad tail of second example

    features = {"input_ids": input_ids, "attention_mask": attention_mask}
    out = transformer_topic_forward(params, features)

    jax.block_until_ready(out["token_embeddings"])
    jax.block_until_ready(out["cls_token_embeddings"])

    assert out["token_embeddings"].shape == (B, S, H + T)
    assert out["cls_token_embeddings"].shape == (B, H + T)
    # CLS row must match row 0 of token embeddings (as in the torch module)
    assert jnp.allclose(out["cls_token_embeddings"], out["token_embeddings"][:, 0, :])

    print("KERNEL_OK")
</pallas_src>

<mosaic_0001>
module attributes {stable_mosaic.version = 11 : i64} {
  func.func @encoder_kernel(%arg0: i32, %arg1: memref<16x32xf32, #tpu.memory_space<vmem>>, %arg2: memref<16x16xf32, #tpu.memory_space<vmem>>, %arg3: memref<32x192xf32, #tpu.memory_space<vmem>>, %arg4: memref<64x32xf32, #tpu.memory_space<vmem>>, %arg5: memref<10x128xf32, #tpu.memory_space<vmem>>, %arg6: memref<16x32xf32, #tpu.memory_space<vmem>>) attributes {dimension_semantics = [#tpu.dimension_semantics<arbitrary>], iteration_bounds = array<i64: 1>, scalar_prefetch = 0 : i64, scratch_operands = 0 : i64, tpu.core_type = #tpu.core_type<tc>, window_params = [{pipeline_mode = #tpu.pipeline_mode<synchronous>, transform_indices = @transform_0, window_bounds = array<i64: 16, 32>}, {pipeline_mode = #tpu.pipeline_mode<synchronous>, transform_indices = @transform_1, window_bounds = array<i64: 16, 16>}, {pipeline_mode = #tpu.pipeline_mode<synchronous>, transform_indices = @transform_2, window_bounds = array<i64: 32, 192>}, {pipeline_mode = #tpu.pipeline_mode<synchronous>, transform_indices = @transform_3, window_bounds = array<i64: 64, 32>}, {pipeline_mode = #tpu.pipeline_mode<synchronous>, transform_indices = @transform_4, window_bounds = array<i64: 10, 128>}, {pipeline_mode = #tpu.pipeline_mode<synchronous>, transform_indices = @transform_5, window_bounds = array<i64: 16, 32>}]} {
    %c0 = arith.constant 0 : index
    %c0_0 = arith.constant 0 : index
    %0 = vector.load %arg1[%c0, %c0_0] : memref<16x32xf32, #tpu.memory_space<vmem>>, vector<16x32xf32>
    %c0_1 = arith.constant 0 : index
    %c0_2 = arith.constant 0 : index
    %1 = vector.load %arg2[%c0_1, %c0_2] : memref<16x16xf32, #tpu.memory_space<vmem>>, vector<16x16xf32>
    %c0_3 = arith.constant 0 : index
    %c0_4 = arith.constant 0 : index
    %2 = vector.load %arg3[%c0_3, %c0_4] : memref<32x192xf32, #tpu.memory_space<vmem>>, vector<32x192xf32>
    %c0_5 = arith.constant 0 : index
    %c0_6 = arith.constant 0 : index
    %3 = vector.load %arg4[%c0_5, %c0_6] : memref<64x32xf32, #tpu.memory_space<vmem>>, vector<64x32xf32>
    %c0_7 = arith.constant 0 : index
    %c0_8 = arith.constant 0 : index
    %4 = vector.load %arg5[%c0_7, %c0_8] : memref<10x128xf32, #tpu.memory_space<vmem>>, vector<10x128xf32>
    %5 = vector.extract_strided_slice %4 {offsets = [0, 0], sizes = [1, 96], strides = [1, 1]} : vector<10x128xf32> to vector<1x96xf32>
    %6 = vector.extract_strided_slice %4 {offsets = [1, 0], sizes = [1, 32], strides = [1, 1]} : vector<10x128xf32> to vector<1x32xf32>
    %7 = vector.extract_strided_slice %4 {offsets = [2, 0], sizes = [1, 64], strides = [1, 1]} : vector<10x128xf32> to vector<1x64xf32>
    %8 = vector.extract_strided_slice %4 {offsets = [3, 0], sizes = [1, 32], strides = [1, 1]} : vector<10x128xf32> to vector<1x32xf32>
    %9 = vector.extract_strided_slice %4 {offsets = [4, 0], sizes = [1, 32], strides = [1, 1]} : vector<10x128xf32> to vector<1x32xf32>
    %10 = vector.extract_strided_slice %4 {offsets = [5, 0], sizes = [1, 32], strides = [1, 1]} : vector<10x128xf32> to vector<1x32xf32>
    %11 = vector.extract_strided_slice %4 {offsets = [6, 0], sizes = [1, 32], strides = [1, 1]} : vector<10x128xf32> to vector<1x32xf32>
    %12 = vector.extract_strided_slice %4 {offsets = [7, 0], sizes = [1, 32], strides = [1, 1]} : vector<10x128xf32> to vector<1x32xf32>
    %13 = vector.extract_strided_slice %4 {offsets = [8, 0], sizes = [1, 32], strides = [1, 1]} : vector<10x128xf32> to vector<1x32xf32>
    %14 = vector.extract_strided_slice %4 {offsets = [9, 0], sizes = [1, 32], strides = [1, 1]} : vector<10x128xf32> to vector<1x32xf32>
    %cst = arith.constant dense<0.000000e+00> : vector<16xf32>
    %15 = vector.multi_reduction <add>, %0, %cst [1] : vector<16x32xf32> to vector<16xf32>
    %16 = vector.shape_cast %15 : vector<16xf32> to vector<16x1xf32>
    %cst_9 = arith.constant 3.200000e+01 : f32
    %17 = vector.broadcast %cst_9 : f32 to vector<16x1xf32>
    %18 = arith.divf %16, %17 : vector<16x1xf32>
    %19 = vector.broadcast %18 : vector<16x1xf32> to vector<16x32xf32>
    %20 = arith.subf %0, %19 : vector<16x32xf32>
    %21 = arith.mulf %20, %20 : vector<16x32xf32>
    %cst_10 = arith.constant dense<0.000000e+00> : vector<16xf32>
    %22 = vector.multi_reduction <add>, %21, %cst_10 [1] : vector<16x32xf32> to vector<16xf32>
    %23 = vector.shape_cast %22 : vector<16xf32> to vector<16x1xf32>
    %cst_11 = arith.constant 3.200000e+01 : f32
    %24 = vector.broadcast %cst_11 : f32 to vector<16x1xf32>
    %25 = arith.divf %23, %24 : vector<16x1xf32>
    %26 = vector.broadcast %18 : vector<16x1xf32> to vector<16x32xf32>
    %27 = arith.subf %0, %26 : vector<16x32xf32>
    %cst_12 = arith.constant 9.99999996E-13 : f32
    %28 = vector.broadcast %cst_12 : f32 to vector<16x1xf32>
    %29 = arith.addf %25, %28 : vector<16x1xf32>
    %30 = math.rsqrt %29 : vector<16x1xf32>
    %31 = vector.broadcast %30 : vector<16x1xf32> to vector<16x32xf32>
    %32 = arith.mulf %27, %31 : vector<16x32xf32>
    %33 = vector.broadcast %9 : vector<1x32xf32> to vector<16x32xf32>
    %34 = arith.mulf %32, %33 : vector<16x32xf32>
    %35 = vector.broadcast %10 : vector<1x32xf32> to vector<16x32xf32>
    %36 = arith.addf %34, %35 : vector<16x32xf32>
    %37 = vector.extract_strided_slice %2 {offsets = [0, 0], sizes = [32, 96], strides = [1, 1]} : vector<32x192xf32> to vector<32x96xf32>
    %cst_13 = arith.constant dense<0.000000e+00> : vector<16x96xf32>
    %38 = tpu.matmul %36, %37, %cst_13 {dimension_numbers = #tpu.dot_dimension_numbers<[1], [0], [0], [1], [0, 0, 1, 1], [], []>} : vector<16x32xf32>, vector<32x96xf32>, vector<16x96xf32> -> vector<16x96xf32>
    %39 = vector.broadcast %5 : vector<1x96xf32> to vector<16x96xf32>
    %40 = arith.addf %38, %39 : vector<16x96xf32>
    %41 = vector.extract_strided_slice %40 {offsets = [0, 0], sizes = [16, 32], strides = [1, 1]} : vector<16x96xf32> to vector<16x32xf32>
    %42 = vector.extract_strided_slice %40 {offsets = [0, 32], sizes = [16, 32], strides = [1, 1]} : vector<16x96xf32> to vector<16x32xf32>
    %43 = vector.extract_strided_slice %40 {offsets = [0, 64], sizes = [16, 32], strides = [1, 1]} : vector<16x96xf32> to vector<16x32xf32>
    %cst_14 = arith.constant dense<0.000000e+00> : vector<16x16xf32>
    %44 = tpu.matmul %41, %42, %cst_14 {dimension_numbers = #tpu.dot_dimension_numbers<[1], [1], [0], [0], [0, 0, 1, 0], [], []>} : vector<16x32xf32>, vector<16x32xf32>, vector<16x16xf32> -> vector<16x16xf32>
    %cst_15 = arith.constant 0.176776692 : f32
    %45 = vector.broadcast %cst_15 : f32 to vector<16x16xf32>
    %46 = arith.mulf %44, %45 : vector<16x16xf32>
    %47 = arith.addf %46, %1 : vector<16x16xf32>
    %cst_16 = arith.constant dense<0xFF800000> : vector<16xf32>
    %48 = vector.multi_reduction <maximumf>, %47, %cst_16 [1] : vector<16x16xf32> to vector<16xf32>
    %49 = vector.shape_cast %48 : vector<16xf32> to vector<16x1xf32>
    %50 = vector.broadcast %49 : vector<16x1xf32> to vector<16x16xf32>
    %51 = arith.subf %47, %50 : vector<16x16xf32>
    %52 = math.exp %51 : vector<16x16xf32>
    %cst_17 = arith.constant dense<0.000000e+00> : vector<16xf32>
    %53 = vector.multi_reduction <add>, %52, %cst_17 [1] : vector<16x16xf32> to vector<16xf32>
    %54 = vector.shape_cast %53 : vector<16xf32> to vector<16x1xf32>
    %55 = tpu.reciprocal %54 {approx = true} : vector<16x1xf32> -> vector<16x1xf32>
    %56 = vector.broadcast %55 : vector<16x1xf32> to vector<16x16xf32>
    %57 = arith.mulf %52, %56 : vector<16x16xf32>
    %cst_18 = arith.constant dense<0.000000e+00> : vector<16x32xf32>
    %58 = tpu.matmul %57, %43, %cst_18 {dimension_numbers = #tpu.dot_dimension_numbers<[1], [0], [0], [1], [0, 0, 1, 1], [], []>} : vector<16x16xf32>, vector<16x32xf32>, vector<16x32xf32> -> vector<16x32xf32>
    %59 = vector.extract_strided_slice %2 {offsets = [0, 96], sizes = [32, 32], strides = [1, 1]} : vector<32x192xf32> to vector<32x32xf32>
    %cst_19 = arith.constant dense<0.000000e+00> : vector<16x32xf32>
    %60 = tpu.matmul %58, %59, %cst_19 {dimension_numbers = #tpu.dot_dimension_numbers<[1], [0], [0], [1], [0, 0, 1, 1], [], []>} : vector<16x32xf32>, vector<32x32xf32>, vector<16x32xf32> -> vector<16x32xf32>
    %61 = vector.broadcast %6 : vector<1x32xf32> to vector<16x32xf32>
    %62 = arith.addf %60, %61 : vector<16x32xf32>
    %63 = arith.addf %36, %62 : vector<16x32xf32>
    %cst_20 = arith.constant dense<0.000000e+00> : vector<16xf32>
    %64 = vector.multi_reduction <add>, %63, %cst_20 [1] : vector<16x32xf32> to vector<16xf32>
    %65 = vector.shape_cast %64 : vector<16xf32> to vector<16x1xf32>
    %cst_21 = arith.constant 3.200000e+01 : f32
    %66 = vector.broadcast %cst_21 : f32 to vector<16x1xf32>
    %67 = arith.divf %65, %66 : vector<16x1xf32>
    %68 = vector.broadcast %67 : vector<16x1xf32> to vector<16x32xf32>
    %69 = arith.subf %63, %68 : vector<16x32xf32>
    %70 = arith.mulf %69, %69 : vector<16x32xf32>
    %cst_22 = arith.constant dense<0.000000e+00> : vector<16xf32>
    %71 = vector.multi_reduction <add>, %70, %cst_22 [1] : vector<16x32xf32> to vector<16xf32>
    %72 = vector.shape_cast %71 : vector<16xf32> to vector<16x1xf32>
    %cst_23 = arith.constant 3.200000e+01 : f32
    %73 = vector.broadcast %cst_23 : f32 to vector<16x1xf32>
    %74 = arith.divf %72, %73 : vector<16x1xf32>
    %75 = vector.broadcast %67 : vector<16x1xf32> to vector<16x32xf32>
    %76 = arith.subf %63, %75 : vector<16x32xf32>
    %cst_24 = arith.constant 9.99999996E-13 : f32
    %77 = vector.broadcast %cst_24 : f32 to vector<16x1xf32>
    %78 = arith.addf %74, %77 : vector<16x1xf32>
    %79 = math.rsqrt %78 : vector<16x1xf32>
    %80 = vector.broadcast %79 : vector<16x1xf32> to vector<16x32xf32>
    %81 = arith.mulf %76, %80 : vector<16x32xf32>
    %82 = vector.broadcast %11 : vector<1x32xf32> to vector<16x32xf32>
    %83 = arith.mulf %81, %82 : vector<16x32xf32>
    %84 = vector.broadcast %12 : vector<1x32xf32> to vector<16x32xf32>
    %85 = arith.addf %83, %84 : vector<16x32xf32>
    %86 = vector.extract_strided_slice %2 {offsets = [0, 128], sizes = [32, 64], strides = [1, 1]} : vector<32x192xf32> to vector<32x64xf32>
    %cst_25 = arith.constant dense<0.000000e+00> : vector<16x64xf32>
    %87 = tpu.matmul %85, %86, %cst_25 {dimension_numbers = #tpu.dot_dimension_numbers<[1], [0], [0], [1], [0, 0, 1, 1], [], []>} : vector<16x32xf32>, vector<32x64xf32>, vector<16x64xf32> -> vector<16x64xf32>
    %88 = vector.broadcast %7 : vector<1x64xf32> to vector<16x64xf32>
    %89 = arith.addf %87, %88 : vector<16x64xf32>
    %90 = arith.mulf %89, %89 : vector<16x64xf32>
    %91 = arith.mulf %89, %90 : vector<16x64xf32>
    %cst_26 = arith.constant 4.471500e-02 : f32
    %92 = vector.broadcast %cst_26 : f32 to vector<16x64xf32>
    %93 = arith.mulf %92, %91 : vector<16x64xf32>
    %94 = arith.addf %89, %93 : vector<16x64xf32>
    %cst_27 = arith.constant 0.797884583 : f32
    %95 = vector.broadcast %cst_27 : f32 to vector<16x64xf32>
    %96 = arith.mulf %95, %94 : vector<16x64xf32>
    %97 = math.tanh %96 : vector<16x64xf32>
    %cst_28 = arith.constant 1.000000e+00 : f32
    %98 = vector.broadcast %cst_28 : f32 to vector<16x64xf32>
    %99 = arith.addf %98, %97 : vector<16x64xf32>
    %cst_29 = arith.constant 5.000000e-01 : f32
    %100 = vector.broadcast %cst_29 : f32 to vector<16x64xf32>
    %101 = arith.mulf %100, %99 : vector<16x64xf32>
    %102 = arith.mulf %89, %101 : vector<16x64xf32>
    %cst_30 = arith.constant dense<0.000000e+00> : vector<16x32xf32>
    %103 = tpu.matmul %102, %3, %cst_30 {dimension_numbers = #tpu.dot_dimension_numbers<[1], [0], [0], [1], [0, 0, 1, 1], [], []>} : vector<16x64xf32>, vector<64x32xf32>, vector<16x32xf32> -> vector<16x32xf32>
    %104 = vector.broadcast %8 : vector<1x32xf32> to vector<16x32xf32>
    %105 = arith.addf %103, %104 : vector<16x32xf32>
    %106 = arith.addf %85, %105 : vector<16x32xf32>
    %cst_31 = arith.constant dense<0.000000e+00> : vector<16xf32>
    %107 = vector.multi_reduction <add>, %106, %cst_31 [1] : vector<16x32xf32> to vector<16xf32>
    %108 = vector.shape_cast %107 : vector<16xf32> to vector<16x1xf32>
    %cst_32 = arith.constant 3.200000e+01 : f32
    %109 = vector.broadcast %cst_32 : f32 to vector<16x1xf32>
    %110 = arith.divf %108, %109 : vector<16x1xf32>
    %111 = vector.broadcast %110 : vector<16x1xf32> to vector<16x32xf32>
    %112 = arith.subf %106, %111 : vector<16x32xf32>
    %113 = arith.mulf %112, %112 : vector<16x32xf32>
    %cst_33 = arith.constant dense<0.000000e+00> : vector<16xf32>
    %114 = vector.multi_reduction <add>, %113, %cst_33 [1] : vector<16x32xf32> to vector<16xf32>
    %115 = vector.shape_cast %114 : vector<16xf32> to vector<16x1xf32>
    %cst_34 = arith.constant 3.200000e+01 : f32
    %116 = vector.broadcast %cst_34 : f32 to vector<16x1xf32>
    %117 = arith.divf %115, %116 : vector<16x1xf32>
    %118 = vector.broadcast %110 : vector<16x1xf32> to vector<16x32xf32>
    %119 = arith.subf %106, %118 : vector<16x32xf32>
    %cst_35 = arith.constant 9.99999996E-13 : f32
    %120 = vector.broadcast %cst_35 : f32 to vector<16x1xf32>
    %121 = arith.addf %117, %120 : vector<16x1xf32>
    %122 = math.rsqrt %121 : vector<16x1xf32>
    %123 = vector.broadcast %122 : vector<16x1xf32> to vector<16x32xf32>
    %124 = arith.mulf %119, %123 : vector<16x32xf32>
    %125 = vector.broadcast %13 : vector<1x32xf32> to vector<16x32xf32>
    %126 = arith.mulf %124, %125 : vector<16x32xf32>
    %127 = vector.broadcast %14 : vector<1x32xf32> to vector<16x32xf32>
    %128 = arith.addf %126, %127 : vector<16x32xf32>
    %c0_36 = arith.constant 0 : index
    %c0_37 = arith.constant 0 : index
    %129 = vector.load %arg6[%c0_36, %c0_37] : memref<16x32xf32, #tpu.memory_space<vmem>>, vector<16x32xf32>
    tpu.vector_store %arg6[%c0_36, %c0_37], %128 {strides = array<i32>} : memref<16x32xf32, #tpu.memory_space<vmem>>, vector<16x32xf32>,
    return
  }
  func.func @transform_0(%arg0: i32) -> (i32, i32) {
    %c0_i32 = arith.constant 0 : i32
    %c0_i32_0 = arith.constant 0 : i32
    %c0_i32_1 = arith.constant 0 : i32
    return %c0_i32, %c0_i32_0 : i32, i32
  }
  func.func @transform_1(%arg0: i32) -> (i32, i32) {
    %c0_i32 = arith.constant 0 : i32
    %c0_i32_0 = arith.constant 0 : i32
    %c0_i32_1 = arith.constant 0 : i32
    return %c0_i32, %c0_i32_0 : i32, i32
  }
  func.func @transform_2(%arg0: i32) -> (i32, i32) {
    %c0_i32 = arith.constant 0 : i32
    %c0_i32_0 = arith.constant 0 : i32
    %c0_i32_1 = arith.constant 0 : i32
    return %c0_i32, %c0_i32_0 : i32, i32
  }
  func.func @transform_3(%arg0: i32) -> (i32, i32) {
    %c0_i32 = arith.constant 0 : i32
    %c0_i32_0 = arith.constant 0 : i32
    %c0_i32_1 = arith.constant 0 : i32
    return %c0_i32, %c0_i32_0 : i32, i32
  }
  func.func @transform_4(%arg0: i32) -> (i32, i32) {
    %c0_i32 = arith.constant 0 : i32
    %c0_i32_0 = arith.constant 0 : i32
    %c0_i32_1 = arith.constant 0 : i32
    return %c0_i32, %c0_i32_0 : i32, i32
  }
  func.func @transform_5(%arg0: i32) -> (i32, i32) {
    %c0_i32 = arith.constant 0 : i32
    %c0_i32_0 = arith.constant 0 : i32
    %c0_i32_1 = arith.constant 0 : i32
    return %c0_i32, %c0_i32_0 : i32, i32
  }
}

</mosaic_0001>

<llo_original>
// kernel: tpu_custom_call.1
$region0: #{tpu_custom_call.1}
  #allocation0 [shape = 'u32[]', space=smem, size = 0x4, offset = 0x4, fixed_abs, tag = 'smem constant byte address 0x4 - core index']
  #allocation1 [shape = 'u32[144,128]{1,0:T(1,128)}', space=vmem, size = 0x12000, scoped, tag = 'internal scratch']
  %s0 = inlined_call_operand.vmem [shape: f32[16,32], index: 0, kind: input, shape index: {}]
  %s1 = inlined_call_operand.vmem [shape: f32[16,16], index: 1, kind: input, shape index: {}]
  %s2 = inlined_call_operand.vmem [shape: f32[32,192], index: 2, kind: input, shape index: {}]
  %s3 = inlined_call_operand.vmem [shape: f32[64,32], index: 3, kind: input, shape index: {}]
  %s4 = inlined_call_operand.hbm [shape: f32[10,128], index: 4, kind: input, shape index: {}]
  %s5 = inlined_call_operand.hbm [shape: f32[16,32], index: 5, kind: output, shape index: {}]
  %s6 = sld [smem:[#allocation0]]
  $region34: #{tpu_custom_call.1} parent=0
    _
  %s8 = ssub.s32 1, %s6
  %s9 = scalar_select 0, %s8, %s6
  $region1: #{tpu_custom_call.1} parent=0
    #allocation2 [shape = 'u8[8192]{0}', space=vmem, size = 0x2000, scoped, tag = 'input window, operand 4, single buffered']
    #allocation3 [shape = 's32[1]{0}', space=sflag, size = 0x4, scoped, tag = 'scoped memory for tpu_custom_call.1']
    #allocation4 [shape = 's32[1]{0}', space=sflag, size = 0x4, scoped, tag = 'scoped memory for tpu_custom_call.1']
    #allocation5 [shape = 'u8[8192]{0}', space=vmem, size = 0x2000, scoped, tag = 'output window, operand 0, single buffered']
    %10 = vsyncpa [#allocation3], 0
    %11 = vsyncpa [#allocation4], 0
    // Predicated region
    $region2: #{tpu_custom_call.1} parent=1 // pred_check
      _
    $region3: #{tpu_custom_call.1} parent=1 // pred_check_branch
      %13 = sbr.rel (0) target = $region5
    $region4: #{tpu_custom_call.1} parent=1 // pred_region
      _
    $region5: #{tpu_custom_call.1} parent=1 // pred_fallthru
      _
    // Predicated region
    $region6: #{tpu_custom_call.1} parent=1 // pred_check
      _
    $region7: #{tpu_custom_call.1} parent=1 // pred_check_branch
      %15 = sbr.rel (0) target = $region9
    $region8: #{tpu_custom_call.1} parent=1 // pred_region
      _
    $region9: #{tpu_custom_call.1} parent=1 // pred_fallthru
      _
    // Predicated region
    $region10: #{tpu_custom_call.1} parent=1 // pred_check
      _
    $region11: #{tpu_custom_call.1} parent=1 // pred_check_branch
      %17 = sbr.rel (0) target = $region13
    $region12: #{tpu_custom_call.1} parent=1 // pred_region
      _
    $region13: #{tpu_custom_call.1} parent=1 // pred_fallthru
      _
    // Predicated region
    $region14: #{tpu_custom_call.1} parent=1 // pred_check
      _
    $region15: #{tpu_custom_call.1} parent=1 // pred_check_branch
      %19 = sbr.rel (0) target = $region17
    $region16: #{tpu_custom_call.1} parent=1 // pred_region
      _
    $region17: #{tpu_custom_call.1} parent=1 // pred_fallthru
      _
    // Predicated region
    $region18: #{tpu_custom_call.1} parent=1 // pred_check
      _
    $region19: #{tpu_custom_call.1} parent=1 // pred_check_branch
      %21 = sbr.rel (0) target = $region21
    $region20: #{tpu_custom_call.1} parent=1 // pred_region
      %s23 = ssub.s32 256, 256
      %24 = vsyncadd [#allocation3], %s23
      %s25 = sshll.u32 [#allocation2], 4
      %s26 = int_to_ptr.vmem [resolvable:$true] %s25
      %31 = dma.hbm_to_vmem [thread:$0]  %s4, 256, %s26, [#allocation3], 128, 128, 8
    $region21: #{tpu_custom_call.1} parent=1 // pred_fallthru
      _
    // Predicated region
    $region22: #{tpu_custom_call.1} parent=1 // pred_check
      _
    $region23: #{tpu_custom_call.1} parent=1 // pred_check_branch
      %33 = sbr.rel (0) target = $region25
    $region24: #{tpu_custom_call.1} parent=1 // pred_region
      %34 = dma.done [#allocation3], 256
    $region25: #{tpu_custom_call.1} parent=1 // pred_fallthru
      _
    %v35 = vld [vmem:[%s0] sm:$0xff]
    %v36 = vld [vmem:[%s0 + $0x8] sm:$0xff]
    %v37 = vld [vmem:[%s1] sm:$0xff]
    %v38 = vld [vmem:[%s1 + $0x8] sm:$0xff]
    %v39 = vld [vmem:[%s2] sm:$0xff]
    %v40 = vld [vmem:[%s2 + $0x8] sm:$0xff]
    %v41 = vld [vmem:[%s2 + $0x10] sm:$0xff]
    %v42 = vld [vmem:[%s2 + $0x18] sm:$0xff]
    %v43 = vld [vmem:[%s2 + $0x20] sm:$0xff]
    %v44 = vld [vmem:[%s2 + $0x28] sm:$0xff]
    %v45 = vld [vmem:[%s2 + $0x30] sm:$0xff]
    %v46 = vld [vmem:[%s2 + $0x38] sm:$0xff]
    %v47 = vld [vmem:[%s3] sm:$0xff]
    %v48 = vld [vmem:[%s3 + $0x8] sm:$0xff]
    %v49 = vld [vmem:[%s3 + $0x10] sm:$0xff]
    %v50 = vld [vmem:[%s3 + $0x18] sm:$0xff]
    %v51 = vld [vmem:[%s3 + $0x20] sm:$0xff]
    %v52 = vld [vmem:[%s3 + $0x28] sm:$0xff]
    %v53 = vld [vmem:[%s3 + $0x30] sm:$0xff]
    %v54 = vld [vmem:[%s3 + $0x38] sm:$0xff]
    %v55 = vld [vmem:[#allocation2] sm:$0xff]
    %v56 = vld [vmem:[#allocation2 + $0x8] sm:$0x3]
    %vm57 = vcmask 261120
    %v58 = vsel %vm57, %v35, 0.0
    %59 = vadd.xlane.f32.xlu0 %v58
    %v60 = vpop.xlane.xlu0 %59
    %v61 = vsel %vm57, %v36, 0.0
    %62 = vadd.xlane.f32.xlu0 %v61
    %v63 = vpop.xlane.xlu0 %62
    %v64 = vrcp.pop 32.0
    %v65 = vmul.f32 %v60, %v64
    %v66 = vmul.f32 %v63, %v64
    %v67 = vsub.f32 %v35, %v65
    %v68 = vsub.f32 %v36, %v66
    %v69 = vmul.f32 %v67, %v67
    %v70 = vmul.f32 %v68, %v68
    %v71 = vsel %vm57, %v69, 0.0
    %72 = vadd.xlane.f32.xlu0 %v71
    %v73 = vpop.xlane.xlu0 %72
    %v74 = vsel %vm57, %v70, 0.0
    %75 = vadd.xlane.f32.xlu0 %v74
    %v76 = vpop.xlane.xlu0 %75
    %v77 = vmul.f32 %v73, %v64
    %v78 = vmul.f32 %v76, %v64
    %v79 = vadd.f32 %v77, 1e-12
    %v80 = vadd.f32 %v78, 1e-12
    %v81 = vrsqrt.pop %v79
    %v82 = vrsqrt.pop %v80
    %v83 = vmul.f32 %v67, %v81
    %v84 = vmul.f32 %v68, %v82
    %v85 = vlaneseq
    %v86 = vshrl.u32 %v85, 7
    %v87 = vsub.s32 4, %v86
    %v88 = vrot.slane %v55, %v87
    %v89 = vmul.f32 %v83, %v88
    %v90 = vmul.f32 %v84, %v88
    %v91 = vlaneseq
    %v92 = vshrl.u32 %v91, 7
    %v93 = vsub.s32 5, %v92
    %v94 = vrot.slane %v55, %v93
    %v95 = vadd.f32 %v89, %v94
    %v96 = vadd.f32 %v90, %v94
    %v97 = vlaneseq
    %v98 = vshrl.u32 %v97, 7
    %v99 = vsub.s32 0, %v98
    %v100 = vrot.slane %v55, %v99
    %v102 = vsel %vm57, %v95, 0
    %v105 = vsel %vm57, %v96, 0
    %107 = vmatprep.subr.mxu0 0.0
    %108 = vmatpush1.msra.mxu0 %v39
    %109 = vmatprep.subr.mxu0 0.0
    %110 = vmatpush1.msra.mxu0 %v41
    %111 = vmatprep.subr.mxu0 0.0
    %112 = vmatpush1.msra.mxu0 %v43
    %113 = vmatprep.subr.mxu0 0.0
    %114 = vmatpush1.msra.mxu0 %v45
    %115 = vmatprep.subr.mxu0 0.0
    %116 = vmatpush1.msra.mxu0 0.0
    %117 = vmatprep.subr.mxu0 0.0
    %118 = vmatpush1.msra.mxu0 0.0
    %119 = vmatprep.subr.mxu0 0.0
    %120 = vmatpush1.msra.mxu0 0.0
    %121 = vmatprep.subr.mxu0 0.0
    %122 = vmatpush1.msra.mxu0 0.0
    %123 = vmatprep.subr.mxu0 0.0
    %124 = vmatpush1.msra.mxu0 0.0
    %125 = vmatprep.subr.mxu0 0.0
    %126 = vmatpush1.msra.mxu0 0.0
    %127 = vmatprep.subr.mxu0 0.0
    %128 = vmatpush1.msra.mxu0 0.0
    %129 = vmatprep.subr.mxu0 0.0
    %130 = vmatpush1.msra.mxu0 0.0
    %131 = vmatprep.subr.mxu0 0.0
    %132 = vmatpush1.msra.mxu0 0.0
    %133 = vmatprep.subr.mxu0 0.0
    %134 = vmatpush1.msra.mxu0 0.0
    %135 = vmatprep.subr.mxu0 0.0
    %136 = vmatpush1.msra.mxu0 0.0
    %137 = vmatprep.subr.mxu0 0.0
    %138 = vmatpush1.msra.mxu0 0.0
    %139 = vmatprep.subr.mxu0 0.0
    %140 = vmatpush1.msra.mxu0 0.0
    %141 = vmatprep.subr.mxu0 0.0
    %142 = vmatpush1.msra.mxu0 0.0
    %143 = vmatprep.subr.mxu0 0.0
    %144 = vmatpush1.msra.mxu0 0.0
    %145 = vmatprep.subr.mxu0 0.0
    %146 = vmatpush1.msra.mxu0 0.0
    %147 = vmatprep.subr.mxu0 0.0
    %148 = vmatpush1.msra.mxu0 0.0
    %149 = vmatprep.subr.mxu0 0.0
    %150 = vmatpush1.msra.mxu0 0.0
    %151 = vmatprep.subr.mxu0 0.0
    %152 = vmatpush1.msra.mxu0 0.0
    %153 = vmatprep.subr.mxu0 0.0
    %154 = vmatpush1.msra.mxu0 0.0
    %155 = vmatprep.subr.mxu0 0.0
    %156 = vmatpush1.msra.mxu0 0.0
    %157 = vmatprep.subr.mxu0 0.0
    %158 = vmatpush1.msra.mxu0 0.0
    %159 = vmatprep.subr.mxu0 0.0
    %160 = vmatpush1.msra.mxu0 0.0
    %161 = vmatprep.subr.mxu0 0.0
    %162 = vmatpush1.msra.mxu0 0.0
    %163 = vmatprep.subr.mxu0 0.0
    %164 = vmatpush1.msra.mxu0 0.0
    %165 = vmatprep.subr.mxu0 0.0
    %166 = vmatpush1.msra.mxu0 0.0
    %167 = vmatprep.subr.mxu0 0.0
    %168 = vmatpush1.msra.mxu0 0.0
    %169 = vmatprep.subr.mxu0 0.0
    %170 = vmatpush1.msra.mxu0 0.0
    %171 = vmatprep.mubr.f32.mxu0 0.0
    %172 = vmatmul.mubr.f32.gmra.mrb[0].mxu0 %v102
    %v173 = vpop.f32.mrb[0].mxu0
    %v174 = vadd.f32 %v100, %v173
    %v175 = vpop.f32.mrb[0].mxu0
    %176 = vmatprep.mubr.f32.mxu0 0.0
    %177 = vmatmul.mubr.f32.gmra.mrb[0].mxu0 %v105
    %v178 = vpop.f32.mrb[0].mxu0
    %v179 = vadd.f32 %v100, %v178
    %v180 = vpop.f32.mrb[0].mxu0
    %181 = vdwg.mxu0
    %184 = vrot.lane.b32.xlu0 %v174, 96
    %v185 = vpop.permute.xlu0 %184
    %186 = vrot.lane.b32.xlu0 %v179, 96
    %v187 = vpop.permute.xlu0 %186
    %v188 = vsel %vm57, %v174, 0
    %v190 = vsel %vm57, %v179, 0
    %v192 = vsel %vm57, %v185, 0
    %v194 = vsel %vm57, %v187, 0
    %196 = vmatprep.subr.mxu0 0.0
    %197 = vmatpush1.xpose.msra.mxu0 %v192
    %198 = vmatprep.subr.mxu0 0.0
    %199 = vmatpush1.xpose.msra.mxu0 %v194
    %200 = vmatprep.subr.mxu0 0.0
    %201 = vmatpush1.xpose.msra.mxu0 0.0
    %202 = vmatprep.subr.mxu0 0.0
    %203 = vmatpush1.xpose.msra.mxu0 0.0
    %204 = vmatprep.subr.mxu0 0.0
    %205 = vmatpush1.xpose.msra.mxu0 0.0
    %206 = vmatprep.subr.mxu0 0.0
    %207 = vmatpush1.xpose.msra.mxu0 0.0
    %208 = vmatprep.subr.mxu0 0.0
    %209 = vmatpush1.xpose.msra.mxu0 0.0
    %210 = vmatprep.subr.mxu0 0.0
    %211 = vmatpush1.xpose.msra.mxu0 0.0
    %212 = vmatprep.subr.mxu0 0.0
    %213 = vmatpush1.xpose.msra.mxu0 0.0
    %214 = vmatprep.subr.mxu0 0.0
    %215 = vmatpush1.xpose.msra.mxu0 0.0
    %216 = vmatprep.subr.mxu0 0.0
    %217 = vmatpush1.xpose.msra.mxu0 0.0
    %218 = vmatprep.subr.mxu0 0.0
    %219 = vmatpush1.xpose.msra.mxu0 0.0
    %220 = vmatprep.subr.mxu0 0.0
    %221 = vmatpush1.xpose.msra.mxu0 0.0
    %222 = vmatprep.subr.mxu0 0.0
    %223 = vmatpush1.xpose.msra.mxu0 0.0
    %224 = vmatprep.subr.mxu0 0.0
    %225 = vmatpush1.xpose.msra.mxu0 0.0
    %226 = vmatprep.subr.mxu0 0.0
    %227 = vmatpush1.xpose.msra.mxu0 0.0
    %228 = vmatprep.subr.mxu0 0.0
    %229 = vmatpush1.xpose.msra.mxu0 0.0
    %230 = vmatprep.subr.mxu0 0.0
    %231 = vmatpush1.xpose.msra.mxu0 0.0
    %232 = vmatprep.subr.mxu0 0.0
    %233 = vmatpush1.xpose.msra.mxu0 0.0
    %234 = vmatprep.subr.mxu0 0.0
    %235 = vmatpush1.xpose.msra.mxu0 0.0
    %236 = vmatprep.subr.mxu0 0.0
    %237 = vmatpush1.xpose.msra.mxu0 0.0
    %238 = vmatprep.subr.mxu0 0.0
    %239 = vmatpush1.xpose.msra.mxu0 0.0
    %240 = vmatprep.subr.mxu0 0.0
    %241 = vmatpush1.xpose.msra.mxu0 0.0
    %242 = vmatprep.subr.mxu0 0.0
    %243 = vmatpush1.xpose.msra.mxu0 0.0
    %244 = vmatprep.subr.mxu0 0.0
    %245 = vmatpush1.xpose.msra.mxu0 0.0
    %246 = vmatprep.subr.mxu0 0.0
    %247 = vmatpush1.xpose.msra.mxu0 0.0
    %248 = vmatprep.subr.mxu0 0.0
    %249 = vmatpush1.xpose.msra.mxu0 0.0
    %250 = vmatprep.subr.mxu0 0.0
    %251 = vmatpush1.xpose.msra.mxu0 0.0
    %252 = vmatprep.subr.mxu0 0.0
    %253 = vmatpush1.xpose.msra.mxu0 0.0
    %254 = vmatprep.subr.mxu0 0.0
    %255 = vmatpush1.xpose.msra.mxu0 0.0
    %256 = vmatprep.subr.mxu0 0.0
    %257 = vmatpush1.xpose.msra.mxu0 0.0
    %258 = vmatprep.subr.mxu0 0.0
    %259 = vmatpush1.xpose.msra.mxu0 0.0
    %260 = vmatprep.mubr.f32.mxu0 0.0
    %261 = vmatmul.mubr.f32.gmra.mrb[0].mxu0 %v188
    %v262 = vpop.f32.mrb[0].mxu0
    %v263 = vadd.f32 0.0, %v262
    %v264 = vpop.f32.mrb[0].mxu0
    %265 = vmatprep.mubr.f32.mxu0 0.0
    %266 = vmatmul.mubr.f32.gmra.mrb[0].mxu0 %v190
    %v267 = vpop.f32.mrb[0].mxu0
    %v268 = vadd.f32 0.0, %v267
    %v269 = vpop.f32.mrb[0].mxu0
    %270 = vdwg.mxu0
    %v271 = vmul.f32 %v263, 0.17677669
    %v272 = vmul.f32 %v268, 0.17677669
    %v273 = vadd.f32 %v271, %v37
    %v274 = vadd.f32 %v272, %v38
    %vm275 = vcmask 130048
    %v276 = vsel %vm275, %v273, -inf
    %277 = vmax.xlane.f32.xlu0 %v276
    %v278 = vpop.xlane.xlu0 %277
    %v279 = vsel %vm275, %v274, -inf
    %280 = vmax.xlane.f32.xlu0 %v279
    %v281 = vpop.xlane.xlu0 %280
    %v282 = vsub.f32 %v273, %v278
    %v283 = vsub.f32 %v274, %v281
    %v284 = vmul.f32 %v282, 1.442695
    %v285 = vpow.pop %v284
    %v286 = vmul.f32 %v283, 1.442695
    %v287 = vpow.pop %v286
    %v288 = vsel %vm275, %v285, 0.0
    %289 = vadd.xlane.f32.xlu0 %v288
    %v290 = vpop.xlane.xlu0 %289
    %v291 = vsel %vm275, %v287, 0.0
    %292 = vadd.xlane.f32.xlu0 %v291
    %v293 = vpop.xlane.xlu0 %292
    %v294 = vrcp.pop %v290
    %v295 = vrcp.pop %v293
    %v296 = vmul.f32 %v285, %v294
    %v297 = vmul.f32 %v287, %v295
    %298 = vrot.lane.b32.xlu0 %v174, 64
    %v299 = vpop.permute.xlu0 %298
    %300 = vrot.lane.b32.xlu0 %v179, 64
    %v301 = vpop.permute.xlu0 %300
    %v305 = vsel %vm275, %v296, 0
    %v308 = vsel %vm275, %v297, 0
    %310 = vmatprep.subr.mxu0 0.0
    %311 = vmatpush1.msra.mxu0 %v299
    %312 = vmatprep.subr.mxu0 0.0
    %313 = vmatpush1.msra.mxu0 %v301
    %314 = vmatprep.subr.mxu0 0.0
    %315 = vmatpush1.msra.mxu0 0.0
    %316 = vmatprep.subr.mxu0 0.0
    %317 = vmatpush1.msra.mxu0 0.0
    %318 = vmatprep.subr.mxu0 0.0
    %319 = vmatpush1.msra.mxu0 0.0
    %320 = vmatprep.subr.mxu0 0.0
    %321 = vmatpush1.msra.mxu0 0.0
    %322 = vmatprep.subr.mxu0 0.0
    %323 = vmatpush1.msra.mxu0 0.0
    %324 = vmatprep.subr.mxu0 0.0
    %325 = vmatpush1.msra.mxu0 0.0
    %326 = vmatprep.subr.mxu0 0.0
    %327 = vmatpush1.msra.mxu0 0.0
    %328 = vmatprep.subr.mxu0 0.0
    %329 = vmatpush1.msra.mxu0 0.0
    %330 = vmatprep.subr.mxu0 0.0
    %331 = vmatpush1.msra.mxu0 0.0
    %332 = vmatprep.subr.mxu0 0.0
    %333 = vmatpush1.msra.mxu0 0.0
    %334 = vmatprep.subr.mxu0 0.0
    %335 = vmatpush1.msra.mxu0 0.0
    %336 = vmatprep.subr.mxu0 0.0
    %337 = vmatpush1.msra.mxu0 0.0
    %338 = vmatprep.subr.mxu0 0.0
    %339 = vmatpush1.msra.mxu0 0.0
    %340 = vmatprep.subr.mxu0 0.0
    %341 = vmatpush1.msra.mxu0 0.0
    %342 = vmatprep.subr.mxu0 0.0
    %343 = vmatpush1.msra.mxu0 0.0
    %344 = vmatprep.subr.mxu0 0.0
    %345 = vmatpush1.msra.mxu0 0.0
    %346 = vmatprep.subr.mxu0 0.0
    %347 = vmatpush1.msra.mxu0 0.0
    %348 = vmatprep.subr.mxu0 0.0
    %349 = vmatpush1.msra.mxu0 0.0
    %350 = vmatprep.subr.mxu0 0.0
    %351 = vmatpush1.msra.mxu0 0.0
    %352 = vmatprep.subr.mxu0 0.0
    %353 = vmatpush1.msra.mxu0 0.0
    %354 = vmatprep.subr.mxu0 0.0
    %355 = vmatpush1.msra.mxu0 0.0
    %356 = vmatprep.subr.mxu0 0.0
    %357 = vmatpush1.msra.mxu0 0.0
    %358 = vmatprep.subr.mxu0 0.0
    %359 = vmatpush1.msra.mxu0 0.0
    %360 = vmatprep.subr.mxu0 0.0
    %361 = vmatpush1.msra.mxu0 0.0
    %362 = vmatprep.subr.mxu0 0.0
    %363 = vmatpush1.msra.mxu0 0.0
    %364 = vmatprep.subr.mxu0 0.0
    %365 = vmatpush1.msra.mxu0 0.0
    %366 = vmatprep.subr.mxu0 0.0
    %367 = vmatpush1.msra.mxu0 0.0
    %368 = vmatprep.subr.mxu0 0.0
    %369 = vmatpush1.msra.mxu0 0.0
    %370 = vmatprep.subr.mxu0 0.0
    %371 = vmatpush1.msra.mxu0 0.0
    %372 = vmatprep.subr.mxu0 0.0
    %373 = vmatpush1.msra.mxu0 0.0
    %374 = vmatprep.mubr.f32.mxu0 0.0
    %375 = vmatmul.mubr.f32.gmra.mrb[0].mxu0 %v305
    %v376 = vpop.f32.mrb[0].mxu0
    %v377 = vadd.f32 0.0, %v376
    %v378 = vpop.f32.mrb[0].mxu0
    %379 = vmatprep.mubr.f32.mxu0 0.0
    %380 = vmatmul.mubr.f32.gmra.mrb[0].mxu0 %v308
    %v381 = vpop.f32.mrb[0].mxu0
    %v382 = vadd.f32 0.0, %v381
    %v383 = vpop.f32.mrb[0].mxu0
    %384 = vdwg.mxu0
    %v385 = vlaneseq
    %v386 = vshrl.u32 %v385, 7
    %v387 = vsub.s32 1, %v386
    %v388 = vrot.slane %v55, %v387
    %393 = vrot.lane.b32.xlu0 %v39, 32
    %v394 = vpop.permute.xlu0 %393
    %395 = vrot.lane.b32.xlu0 %v41, 32
    %v396 = vpop.permute.xlu0 %395
    %397 = vrot.lane.b32.xlu0 %v43, 32
    %v398 = vpop.permute.xlu0 %397
    %399 = vrot.lane.b32.xlu0 %v45, 32
    %v400 = vpop.permute.xlu0 %399
    %v406 = vsel %vm57, %v377, 0
    %v409 = vsel %vm57, %v382, 0
    %411 = vmatprep.subr.mxu0 0.0
    %412 = vmatpush1.msra.mxu0 %v394
    %413 = vmatprep.subr.mxu0 0.0
    %414 = vmatpush1.msra.mxu0 %v396
    %415 = vmatprep.subr.mxu0 0.0
    %416 = vmatpush1.msra.mxu0 %v398
    %417 = vmatprep.subr.mxu0 0.0
    %418 = vmatpush1.msra.mxu0 %v400
    %419 = vmatprep.subr.mxu0 0.0
    %420 = vmatpush1.msra.mxu0 0.0
    %421 = vmatprep.subr.mxu0 0.0
    %422 = vmatpush1.msra.mxu0 0.0
    %423 = vmatprep.subr.mxu0 0.0
    %424 = vmatpush1.msra.mxu0 0.0
    %425 = vmatprep.subr.mxu0 0.0
    %426 = vmatpush1.msra.mxu0 0.0
    %427 = vmatprep.subr.mxu0 0.0
    %428 = vmatpush1.msra.mxu0 0.0
    %429 = vmatprep.subr.mxu0 0.0
    %430 = vmatpush1.msra.mxu0 0.0
    %431 = vmatprep.subr.mxu0 0.0
    %432 = vmatpush1.msra.mxu0 0.0
    %433 = vmatprep.subr.mxu0 0.0
    %434 = vmatpush1.msra.mxu0 0.0
    %435 = vmatprep.subr.mxu0 0.0
    %436 = vmatpush1.msra.mxu0 0.0
    %437 = vmatprep.subr.mxu0 0.0
    %438 = vmatpush1.msra.mxu0 0.0
    %439 = vmatprep.subr.mxu0 0.0
    %440 = vmatpush1.msra.mxu0 0.0
    %441 = vmatprep.subr.mxu0 0.0
    %442 = vmatpush1.msra.mxu0 0.0
    %443 = vmatprep.subr.mxu0 0.0
    %444 = vmatpush1.msra.mxu0 0.0
    %445 = vmatprep.subr.mxu0 0.0
    %446 = vmatpush1.msra.mxu0 0.0
    %447 = vmatprep.subr.mxu0 0.0
    %448 = vmatpush1.msra.mxu0 0.0
    %449 = vmatprep.subr.mxu0 0.0
    %450 = vmatpush1.msra.mxu0 0.0
    %451 = vmatprep.subr.mxu0 0.0
    %452 = vmatpush1.msra.mxu0 0.0
    %453 = vmatprep.subr.mxu0 0.0
    %454 = vmatpush1.msra.mxu0 0.0
    %455 = vmatprep.subr.mxu0 0.0
    %456 = vmatpush1.msra.mxu0 0.0
    %457 = vmatprep.subr.mxu0 0.0
    %458 = vmatpush1.msra.mxu0 0.0
    %459 = vmatprep.subr.mxu0 0.0
    %460 = vmatpush1.msra.mxu0 0.0
    %461 = vmatprep.subr.mxu0 0.0
    %462 = vmatpush1.msra.mxu0 0.0
    %463 = vmatprep.subr.mxu0 0.0
    %464 = vmatpush1.msra.mxu0 0.0
    %465 = vmatprep.subr.mxu0 0.0
    %466 = vmatpush1.msra.mxu0 0.0
    %467 = vmatprep.subr.mxu0 0.0
    %468 = vmatpush1.msra.mxu0 0.0
    %469 = vmatprep.subr.mxu0 0.0
    %470 = vmatpush1.msra.mxu0 0.0
    %471 = vmatprep.subr.mxu0 0.0
    %472 = vmatpush1.msra.mxu0 0.0
    %473 = vmatprep.subr.mxu0 0.0
    %474 = vmatpush1.msra.mxu0 0.0
    %475 = vmatprep.mubr.f32.mxu0 0.0
    %476 = vmatmul.mubr.f32.gmra.mrb[0].mxu0 %v406
    %v477 = vpop.f32.mrb[0].mxu0
    %v478 = vadd.f32 %v388, %v477
    %v479 = vpop.f32.mrb[0].mxu0
    %480 = vmatprep.mubr.f32.mxu0 0.0
    %481 = vmatmul.mubr.f32.gmra.mrb[0].mxu0 %v409
    %v482 = vpop.f32.mrb[0].mxu0
    %v483 = vadd.f32 %v388, %v482
    %v484 = vpop.f32.mrb[0].mxu0
    %485 = vdwg.mxu0
    %v486 = vadd.f32 %v95, %v478
    %v487 = vadd.f32 %v96, %v483
    %v488 = vsel %vm57, %v486, 0.0
    %489 = vadd.xlane.f32.xlu0 %v488
    %v490 = vpop.xlane.xlu0 %489
    %v491 = vsel %vm57, %v487, 0.0
    %492 = vadd.xlane.f32.xlu0 %v491
    %v493 = vpop.xlane.xlu0 %492
    %v494 = vmul.f32 %v490, %v64
    %v495 = vmul.f32 %v493, %v64
    %v496 = vsub.f32 %v486, %v494
    %v497 = vsub.f32 %v487, %v495
    %v498 = vmul.f32 %v496, %v496
    %v499 = vmul.f32 %v497, %v497
    %v500 = vsel %vm57, %v498, 0.0
    %501 = vadd.xlane.f32.xlu0 %v500
    %v502 = vpop.xlane.xlu0 %501
    %v503 = vsel %vm57, %v499, 0.0
    %504 = vadd.xlane.f32.xlu0 %v503
    %v505 = vpop.xlane.xlu0 %504
    %v506 = vmul.f32 %v502, %v64
    %v507 = vmul.f32 %v505, %v64
    %v508 = vadd.f32 %v506, 1e-12
    %v509 = vadd.f32 %v507, 1e-12
    %v510 = vrsqrt.pop %v508
    %v511 = vrsqrt.pop %v509
    %v512 = vmul.f32 %v496, %v510
    %v513 = vmul.f32 %v497, %v511
    %v514 = vlaneseq
    %v515 = vshrl.u32 %v514, 7
    %v516 = vsub.s32 6, %v515
    %v517 = vrot.slane %v55, %v516
    %v518 = vmul.f32 %v512, %v517
    %v519 = vmul.f32 %v513, %v517
    %v520 = vlaneseq
    %v521 = vshrl.u32 %v520, 7
    %v522 = vsub.s32 7, %v521
    %v523 = vrot.slane %v55, %v522
    %v524 = vadd.f32 %v518, %v523
    %v525 = vadd.f32 %v519, %v523
    %v526 = vlaneseq
    %v527 = vshrl.u32 %v526, 7
    %v528 = vsub.s32 2, %v527
    %v529 = vrot.slane %v55, %v528
    %v531 = vsel %vm57, %v524, 0
    %v534 = vsel %vm57, %v525, 0
    %536 = vmatprep.subr.mxu0 0.0
    %537 = vmatpush1.msra.mxu0 %v40
    %538 = vmatprep.subr.mxu0 0.0
    %539 = vmatpush1.msra.mxu0 %v42
    %540 = vmatprep.subr.mxu0 0.0
    %541 = vmatpush1.msra.mxu0 %v44
    %542 = vmatprep.subr.mxu0 0.0
    %543 = vmatpush1.msra.mxu0 %v46
    %544 = vmatprep.subr.mxu0 0.0
    %545 = vmatpush1.msra.mxu0 0.0
    %546 = vmatprep.subr.mxu0 0.0
    %547 = vmatpush1.msra.mxu0 0.0
    %548 = vmatprep.subr.mxu0 0.0
    %549 = vmatpush1.msra.mxu0 0.0
    %550 = vmatprep.subr.mxu0 0.0
    %551 = vmatpush1.msra.mxu0 0.0
    %552 = vmatprep.subr.mxu0 0.0
    %553 = vmatpush1.msra.mxu0 0.0
    %554 = vmatprep.subr.mxu0 0.0
    %555 = vmatpush1.msra.mxu0 0.0
    %556 = vmatprep.subr.mxu0 0.0
    %557 = vmatpush1.msra.mxu0 0.0
    %558 = vmatprep.subr.mxu0 0.0
    %559 = vmatpush1.msra.mxu0 0.0
    %560 = vmatprep.subr.mxu0 0.0
    %561 = vmatpush1.msra.mxu0 0.0
    %562 = vmatprep.subr.mxu0 0.0
    %563 = vmatpush1.msra.mxu0 0.0
    %564 = vmatprep.subr.mxu0 0.0
    %565 = vmatpush1.msra.mxu0 0.0
    %566 = vmatprep.subr.mxu0 0.0
    %567 = vmatpush1.msra.mxu0 0.0
    %568 = vmatprep.subr.mxu0 0.0
    %569 = vmatpush1.msra.mxu0 0.0
    %570 = vmatprep.subr.mxu0 0.0
    %571 = vmatpush1.msra.mxu0 0.0
    %572 = vmatprep.subr.mxu0 0.0
    %573 = vmatpush1.msra.mxu0 0.0
    %574 = vmatprep.subr.mxu0 0.0
    %575 = vmatpush1.msra.mxu0 0.0
    %576 = vmatprep.subr.mxu0 0.0
    %577 = vmatpush1.msra.mxu0 0.0
    %578 = vmatprep.subr.mxu0 0.0
    %579 = vmatpush1.msra.mxu0 0.0
    %580 = vmatprep.subr.mxu0 0.0
    %581 = vmatpush1.msra.mxu0 0.0
    %582 = vmatprep.subr.mxu0 0.0
    %583 = vmatpush1.msra.mxu0 0.0
    %584 = vmatprep.subr.mxu0 0.0
    %585 = vmatpush1.msra.mxu0 0.0
    %586 = vmatprep.subr.mxu0 0.0
    %587 = vmatpush1.msra.mxu0 0.0
    %588 = vmatprep.subr.mxu0 0.0
    %589 = vmatpush1.msra.mxu0 0.0
    %590 = vmatprep.subr.mxu0 0.0
    %591 = vmatpush1.msra.mxu0 0.0
    %592 = vmatprep.subr.mxu0 0.0
    %593 = vmatpush1.msra.mxu0 0.0
    %594 = vmatprep.subr.mxu0 0.0
    %595 = vmatpush1.msra.mxu0 0.0
    %596 = vmatprep.subr.mxu0 0.0
    %597 = vmatpush1.msra.mxu0 0.0
    %598 = vmatprep.subr.mxu0 0.0
    %599 = vmatpush1.msra.mxu0 0.0
    %600 = vmatprep.mubr.f32.mxu0 0.0
    %601 = vmatmul.mubr.f32.gmra.mrb[0].mxu0 %v531
    %v602 = vpop.f32.mrb[0].mxu0
    %v603 = vadd.f32 %v529, %v602
    %v604 = vpop.f32.mrb[0].mxu0
    %605 = vmatprep.mubr.f32.mxu0 0.0
    %606 = vmatmul.mubr.f32.gmra.mrb[0].mxu0 %v534
    %v607 = vpop.f32.mrb[0].mxu0
    %v608 = vadd.f32 %v529, %v607
    %v609 = vpop.f32.mrb[0].mxu0
    %610 = vdwg.mxu0
    %v611 = vmul.f32 %v603, %v603
    %v612 = vmul.f32 %v608, %v608
    %v613 = vmul.f32 %v603, %v611
    %v614 = vmul.f32 %v608, %v612
    %v615 = vmul.f32 %v613, 0.044715
    %v616 = vmul.f32 %v614, 0.044715
    %v617 = vadd.f32 %v603, %v615
    %v618 = vadd.f32 %v608, %v616
    %v619 = vmul.f32 %v617, 0.7978846
    %v620 = vmul.f32 %v618, 0.7978846
    %v621 = vtanh.pop %v619
    %v622 = vtanh.pop %v620
    %v623 = vadd.f32 %v621, 1.0
    %v624 = vadd.f32 %v622, 1.0
    %v625 = vmul.f32 %v623, 0.5
    %v626 = vmul.f32 %v624, 0.5
    %v627 = vmul.f32 %v603, %v625
    %v628 = vmul.f32 %v608, %v626
    %v629 = vlaneseq
    %v630 = vshrl.u32 %v629, 7
    %v631 = vsub.s32 3, %v630
    %v632 = vrot.slane %v55, %v631
    %vm633 = vcmask 523264
    %v635 = vsel %vm633, %v627, 0
    %v638 = vsel %vm633, %v628, 0
    %640 = vmatprep.subr.mxu0 0.0
    %641 = vmatpush1.msra.mxu0 %v47
    %642 = vmatprep.subr.mxu0 0.0
    %643 = vmatpush1.msra.mxu0 %v48
    %644 = vmatprep.subr.mxu0 0.0
    %645 = vmatpush1.msra.mxu0 %v49
    %646 = vmatprep.subr.mxu0 0.0
    %647 = vmatpush1.msra.mxu0 %v50
    %648 = vmatprep.subr.mxu0 0.0
    %649 = vmatpush1.msra.mxu0 %v51
    %650 = vmatprep.subr.mxu0 0.0
    %651 = vmatpush1.msra.mxu0 %v52
    %652 = vmatprep.subr.mxu0 0.0
    %653 = vmatpush1.msra.mxu0 %v53
    %654 = vmatprep.subr.mxu0 0.0
    %655 = vmatpush1.msra.mxu0 %v54
    %656 = vmatprep.subr.mxu0 0.0
    %657 = vmatpush1.msra.mxu0 0.0
    %658 = vmatprep.subr.mxu0 0.0
    %659 = vmatpush1.msra.mxu0 0.0
    %660 = vmatprep.subr.mxu0 0.0
    %661 = vmatpush1.msra.mxu0 0.0
    %662 = vmatprep.subr.mxu0 0.0
    %663 = vmatpush1.msra.mxu0 0.0
    %664 = vmatprep.subr.mxu0 0.0
    %665 = vmatpush1.msra.mxu0 0.0
    %666 = vmatprep.subr.mxu0 0.0
    %667 = vmatpush1.msra.mxu0 0.0
    %668 = vmatprep.subr.mxu0 0.0
    %669 = vmatpush1.msra.mxu0 0.0
    %670 = vmatprep.subr.mxu0 0.0
    %671 = vmatpush1.msra.mxu0 0.0
    %672 = vmatprep.subr.mxu0 0.0
    %673 = vmatpush1.msra.mxu0 0.0
    %674 = vmatprep.subr.mxu0 0.0
    %675 = vmatpush1.msra.mxu0 0.0
    %676 = vmatprep.subr.mxu0 0.0
    %677 = vmatpush1.msra.mxu0 0.0
    %678 = vmatprep.subr.mxu0 0.0
    %679 = vmatpush1.msra.mxu0 0.0
    %680 = vmatprep.subr.mxu0 0.0
    %681 = vmatpush1.msra.mxu0 0.0
    %682 = vmatprep.subr.mxu0 0.0
    %683 = vmatpush1.msra.mxu0 0.0
    %684 = vmatprep.subr.mxu0 0.0
    %685 = vmatpush1.msra.mxu0 0.0
    %686 = vmatprep.subr.mxu0 0.0
    %687 = vmatpush1.msra.mxu0 0.0
    %688 = vmatprep.subr.mxu0 0.0
    %689 = vmatpush1.msra.mxu0 0.0
    %690 = vmatprep.subr.mxu0 0.0
    %691 = vmatpush1.msra.mxu0 0.0
    %692 = vmatprep.subr.mxu0 0.0
    %693 = vmatpush1.msra.mxu0 0.0
    %694 = vmatprep.subr.mxu0 0.0
    %695 = vmatpush1.msra.mxu0 0.0
    %696 = vmatprep.subr.mxu0 0.0
    %697 = vmatpush1.msra.mxu0 0.0
    %698 = vmatprep.subr.mxu0 0.0
    %699 = vmatpush1.msra.mxu0 0.0
    %700 = vmatprep.subr.mxu0 0.0
    %701 = vmatpush1.msra.mxu0 0.0
    %702 = vmatprep.subr.mxu0 0.0
    %703 = vmatpush1.msra.mxu0 0.0
    %704 = vmatprep.mubr.f32.mxu0 0.0
    %705 = vmatmul.mubr.f32.gmra.mrb[0].mxu0 %v635
    %v706 = vpop.f32.mrb[0].mxu0
    %v707 = vadd.f32 %v632, %v706
    %v708 = vpop.f32.mrb[0].mxu0
    %709 = vmatprep.mubr.f32.mxu0 0.0
    %710 = vmatmul.mubr.f32.gmra.mrb[0].mxu0 %v638
    %v711 = vpop.f32.mrb[0].mxu0
    %v712 = vadd.f32 %v632, %v711
    %v713 = vpop.f32.mrb[0].mxu0
    %714 = vdwg.mxu0
    %v715 = vadd.f32 %v524, %v707
    %v716 = vadd.f32 %v525, %v712
    %v717 = vsel %vm57, %v715, 0.0
    %718 = vadd.xlane.f32.xlu0 %v717
    %v719 = vpop.xlane.xlu0 %718
    %v720 = vsel %vm57, %v716, 0.0
    %721 = vadd.xlane.f32.xlu0 %v720
    %v722 = vpop.xlane.xlu0 %721
    %v723 = vmul.f32 %v719, %v64
    %v724 = vmul.f32 %v722, %v64
    %v725 = vsub.f32 %v715, %v723
    %v726 = vsub.f32 %v716, %v724
    %v727 = vmul.f32 %v725, %v725
    %v728 = vmul.f32 %v726, %v726
    %v729 = vsel %vm57, %v727, 0.0
    %730 = vadd.xlane.f32.xlu0 %v729
    %v731 = vpop.xlane.xlu0 %730
    %v732 = vsel %vm57, %v728, 0.0
    %733 = vadd.xlane.f32.xlu0 %v732
    %v734 = vpop.xlane.xlu0 %733
    %v735 = vmul.f32 %v731, %v64
    %v736 = vmul.f32 %v734, %v64
    %v737 = vadd.f32 %v735, 1e-12
    %v738 = vadd.f32 %v736, 1e-12
    %v739 = vrsqrt.pop %v737
    %v740 = vrsqrt.pop %v738
    %v741 = vmul.f32 %v725, %v739
    %v742 = vmul.f32 %v726, %v740
    %v743 = vlaneseq
    %v744 = vshrl.u32 %v743, 7
    %v745 = vsub.s32 0, %v744
    %v746 = vrot.slane %v56, %v745
    %v747 = vmul.f32 %v741, %v746
    %v748 = vmul.f32 %v742, %v746
    %v749 = vlaneseq
    %v750 = vshrl.u32 %v749, 7
    %v751 = vsub.s32 1, %v750
    %v752 = vrot.slane %v56, %v751
    %v753 = vadd.f32 %v747, %v752
    %v754 = vadd.f32 %v748, %v752
    %755 = vst.msk [vmem:[#allocation5] sm:$0xff] %vm57, %v753
    %756 = vst.msk [vmem:[#allocation5 + $0x8] sm:$0xff] %vm57, %v754
    // Predicated region
    $region26: #{tpu_custom_call.1} parent=1 // pred_check
      _
    $region27: #{tpu_custom_call.1} parent=1 // pred_check_branch
      %758 = sbr.rel (0) target = $region29
    $region28: #{tpu_custom_call.1} parent=1 // pred_region
      %s760 = ssub.s32 256, 256
      %761 = vsyncadd [#allocation4], %s760
      %s762 = sshll.u32 [#allocation5], 4
      %s763 = int_to_ptr.vmem [resolvable:$true] %s762
      %768 = dma.vmem_to_hbm [thread:$0]  %s763, 256, %s5, [#allocation4], 128, 128, 8
    $region29: #{tpu_custom_call.1} parent=1 // pred_fallthru
      _
    // Predicated region
    $region30: #{tpu_custom_call.1} parent=1 // pred_check
      _
    $region31: #{tpu_custom_call.1} parent=1 // pred_check_branch
      %770 = sbr.rel (0) target = $region33
    $region32: #{tpu_custom_call.1} parent=1 // pred_region
      %771 = dma.done [#allocation4], 256
    $region33: #{tpu_custom_call.1} parent=1 // pred_fallthru
      _
    %772 = vsyncpa [#allocation3], 1
    %773 = vsyncpa [#allocation4], 1

</llo_original>
